<compile_context>
chip_gen: v7x
topology: tpu7x:2x2x1
jax: 0.10.0
libtpu: 0.0.40
codegen_flags: <defaults>
</compile_context>

<pallas_src>
import numpy as np
import jax
import jax.numpy as jnp
from jax.experimental import pallas as pl
from jax.experimental.pallas import tpu as pltpu


# ----------------------------------------------------------------------------- kernel

def decoder_kernel(h0_ref,      # (Bp, L)        initial hidden state, zero-padded to 8 sublanes
                   pack_ref,    # (2L+16, C)     packed params: w_comb / b_comb / wdense_T / bdense
                   out_ref):    # (T*Bp, F)      flat decoder outputs, step-major (torch.cat order)
    Bp, L = h0_ref.shape
    TBp, F = out_ref.shape
    T = TBp // Bp

    # Unpack parameters (static, sublane-aligned slices of the single packed operand) and
    # hoist the per-step bias broadcast out of the unrolled loop.
    w_comb = pack_ref[0:L, 0:L]                                       # (L, L)
    b_comb = jnp.broadcast_to(pack_ref[L:L + 1, 0:L], (Bp, L))        # (Bp, L)
    wdense = pack_ref[L + 8:2 * L + 8, 0:F]                           # (L, F)
    bdense = pack_ref[2 * L + 8:2 * L + 9, 0:F]                       # (1, F)

    # Serial recurrence: one (Bp, L) @ (L, L) MXU matmul + tanh per step on the critical
    # path. T is a trace-time constant -> static unroll; hidden states stay in vregs.
    h = h0_ref[...]
    hs = []
    for _ in range(T):
        h = jnp.tanh(jnp.dot(h, w_comb, preferred_element_type=jnp.float32) + b_comb)
        hs.append(h)
    h_all = jnp.concatenate(hs, axis=0)                               # (T*Bp, L) in vregs

    # Batched output projection: one (T*Bp, L) @ (L, F) matmul + bias, one store.
    out_ref[...] = jnp.dot(h_all, wdense, preferred_element_type=jnp.float32) + bdense


# ----------------------------------------------------------------------------- wrapper

def decoder_forward(h_0, params, seq_len):
    """Pallas implementation of Decoder.forward(h_0, seq_len) -> (B, seq_len, n_features)."""
    L = params["w_comb"].shape[0]
    F = params["wdense_T"].shape[1]
    h0 = h_0.reshape(-1, L)                     # h_0.squeeze(): (1, B, L) -> (B, L)
    B = h0.shape[0]

    # Pad batch to the f32 sublane tile (8): unmasked vector ops, pad rows are free MXU filler.
    Bp = ((B + 7) // 8) * 8
    h0p = h0 if Bp == B else jnp.zeros((Bp, L), jnp.float32).at[:B, :].set(h0)

    # Whole arrays fit trivially in VMEM at these sizes -> gridless call, 2 input DMAs.
    vmem = pl.BlockSpec(memory_space=pltpu.MemorySpace.VMEM)
    flat = pl.pallas_call(
        decoder_kernel,
        out_shape=jax.ShapeDtypeStruct((seq_len * Bp, F), jnp.float32),
        in_specs=[vmem, vmem],
        out_specs=vmem,
    )(h0p, params["pack"])

    # Drop pad rows and reproduce torch.cat(axis=0) + .view(-1, seq_len, F):
    # the sliced (T, B, F) flattened row-major is exactly the original step-major (T*B, F),
    # so the final reshape to (B, T, F) is the same metadata-only reinterpretation.
    return flat.reshape(seq_len, Bp, F)[:, :B, :].reshape(B, seq_len, F)


# ----------------------------------------------------------------------------- params

def make_params(key, n_features, latent_dim):
    """PyTorch-shaped params (RNNCell + Linear, U(-1/sqrt(L), 1/sqrt(L))), the one-time folded
    recurrence matrices, and the single packed kernel operand."""
    ks = jax.random.split(key, 6)
    s = float(latent_dim) ** -0.5

    def u(k, shape):
        return jax.random.uniform(k, shape, jnp.float32, -s, s)

    w_ih = u(ks[0], (latent_dim, n_features))   # RNNCell weight_ih: (L, F)
    w_hh = u(ks[1], (latent_dim, latent_dim))   # RNNCell weight_hh: (L, L)
    b_ih = u(ks[2], (latent_dim,))
    b_hh = u(ks[3], (latent_dim,))
    w_de = u(ks[4], (n_features, latent_dim))   # Linear weight: (F, L)
    b_de = u(ks[5], (n_features,))

    wih_d_T = w_ih.T                            # (F, L)
    whh_d_T = w_hh.T                            # (L, L)
    b_d = (b_ih + b_hh)[None, :]                # (1, L)
    wdense_T = w_de.T                           # (L, F)
    bdense = b_de[None, :]                      # (1, F)

    # One-time algebraic fold of the Linear into the RNNCell recurrence.
    w_comb = wdense_T @ wih_d_T + whh_d_T       # (L, L)
    b_comb = bdense @ wih_d_T + b_d             # (1, L)

    # Single packed operand (sublane-aligned sections; one HBM->VMEM DMA instead of four).
    L, F = latent_dim, n_features
    C = max(L, F)
    pack = jnp.zeros((2 * L + 16, C), jnp.float32)
    pack = pack.at[0:L, 0:L].set(w_comb)
    pack = pack.at[L, 0:L].set(b_comb[0])
    pack = pack.at[L + 8:2 * L + 8, 0:F].set(wdense_T)
    pack = pack.at[2 * L + 8, 0:F].set(bdense[0])

    return {
        "wih_d_T": wih_d_T, "whh_d_T": whh_d_T, "b_d": b_d,
        "wdense_T": wdense_T, "bdense": bdense,
        "w_comb": w_comb, "b_comb": b_comb,
        "pack": pack,
    }


# ----------------------------------------------------------------------------- references

def reference_forward(h_0, params, seq_len):
    """Pure-JAX transliteration of Decoder.forward (unfolded, PyTorch semantics)."""
    L = params["whh_d_T"].shape[0]
    F = params["wdense_T"].shape[1]
    h = h_0.reshape(-1, L)
    B = h.shape[0]
    x_i = h @ params["wdense_T"] + params["bdense"]
    rows = []
    for _ in range(seq_len):
        h = jnp.tanh(x_i @ params["wih_d_T"] + h @ params["whh_d_T"] + params["b_d"])
        x_i = h @ params["wdense_T"] + params["bdense"]
        rows.append(x_i)
    flat = jnp.concatenate(rows, axis=0)        # torch.cat(axis=0): (T*B, F), step-major
    return flat.reshape(B, seq_len, F)          # .view(-1, seq_len, F)


def reference_forward_folded(h_0, params, seq_len):
    """Pure-JAX mirror of the kernel's math (folded recurrence + batched projection)."""
    L = params["w_comb"].shape[0]
    F = params["wdense_T"].shape[1]
    h = h_0.reshape(-1, L)
    B = h.shape[0]
    hs = []
    for _ in range(seq_len):
        h = jnp.tanh(h @ params["w_comb"] + params["b_comb"])
        hs.append(h)
    flat = jnp.concatenate(hs, axis=0) @ params["wdense_T"] + params["bdense"]
    return flat.reshape(B, seq_len, F)


def fold_check_float64(h_0, params, seq_len):
    """Exact (float64, host numpy) check that the algebraic fold + output ordering are
    identical to the unfolded Decoder math. Returns max abs difference."""
    f64 = lambda a: np.asarray(a, dtype=np.float64)
    wih, whh, bd = f64(params["wih_d_T"]), f64(params["whh_d_T"]), f64(params["b_d"])
    wde, bde = f64(params["wdense_T"]), f64(params["bdense"])
    h0 = f64(h_0).reshape(-1, whh.shape[0])
    B = h0.shape[0]

    # Unfolded (PyTorch semantics).
    h = h0.copy()
    x_i = h @ wde + bde
    rows = []
    for _ in range(seq_len):
        h = np.tanh(x_i @ wih + h @ whh + bd)
        x_i = h @ wde + bde
        rows.append(x_i)
    ref = np.concatenate(rows, axis=0).reshape(B, seq_len, -1)

    # Folded (kernel math).
    wc = wde @ wih + whh
    bc = bde @ wih + bd
    h = h0.copy()
    hs = []
    for _ in range(seq_len):
        h = np.tanh(h @ wc + bc)
        hs.append(h)
    fold = (np.concatenate(hs, axis=0) @ wde + bde).reshape(B, seq_len, -1)

    return float(np.max(np.abs(ref - fold)))


# ----------------------------------------------------------------------------- main

if __name__ == "__main__":
    B, T, F, L = 2, 8, 4, 32      # batch, seq_len, n_features, latent_dim

    key = jax.random.PRNGKey(0)
    k_h, k_p = jax.random.split(key)
    params = make_params(k_p, n_features=F, latent_dim=L)
    # h_0 as produced by an nn.RNN encoder: (num_layers=1, B, L)
    h_0 = jax.random.normal(k_h, (1, B, L), dtype=jnp.float32)

    fwd = jax.jit(decoder_forward, static_argnames="seq_len")
    out = jax.block_until_ready(fwd(h_0, params, seq_len=T))
    assert out.shape == (B, T, F)

    # (1) Exact float64 validation of the dense-into-recurrence fold and the
    #     cat(axis=0) + view(-1, T, F) output ordering.
    fold_err = fold_check_float64(h_0, params, T)
    assert fold_err < 1e-9, f"fold algebra / index mismatch: {fold_err}"

    # (2) Kernel vs a pure-JAX mirror of the same (folded) op sequence -- tight.
    ref_folded = reference_forward_folded(h_0, params, T)
    assert jnp.allclose(out, ref_folded, atol=1e-4, rtol=1e-4), "kernel vs folded-JAX mismatch"

    # (3) Kernel vs the direct (unfolded) Decoder reference. Tolerance allows for TPU
    #     default-precision f32 matmul rounding under the fold's reassociation.
    ref = reference_forward(h_0, params, T)
    assert jnp.allclose(out, ref, atol=5e-3, rtol=5e-3), "kernel vs Decoder reference mismatch"

    print("KERNEL_OK")
</pallas_src>

<mosaic_0001>
module attributes {stable_mosaic.version = 11 : i64} {
  func.func @decoder_kernel(%arg0: memref<8x32xf32, #tpu.memory_space<vmem>>, %arg1: memref<80x32xf32, #tpu.memory_space<vmem>>, %arg2: memref<64x4xf32, #tpu.memory_space<vmem>>) attributes {dimension_semantics = [], scalar_prefetch = 0 : i64, scratch_operands = 0 : i64, tpu.core_type = #tpu.core_type<tc>} {
    %c0 = arith.constant 0 : index
    %c0_0 = arith.constant 0 : index
    %0 = vector.load %arg1[%c0, %c0_0] : memref<80x32xf32, #tpu.memory_space<vmem>>, vector<32x32xf32>
    %c32 = arith.constant 32 : index
    %c0_1 = arith.constant 0 : index
    %1 = vector.load %arg1[%c32, %c0_1] : memref<80x32xf32, #tpu.memory_space<vmem>>, vector<1x32xf32>
    %2 = vector.shape_cast %1 : vector<1x32xf32> to vector<1x32xf32>
    %3 = vector.broadcast %2 : vector<1x32xf32> to vector<8x32xf32>
    %c40 = arith.constant 40 : index
    %c0_2 = arith.constant 0 : index
    %4 = vector.load %arg1[%c40, %c0_2] : memref<80x32xf32, #tpu.memory_space<vmem>>, vector<32x4xf32>
    %c72 = arith.constant 72 : index
    %c0_3 = arith.constant 0 : index
    %5 = vector.load %arg1[%c72, %c0_3] : memref<80x32xf32, #tpu.memory_space<vmem>>, vector<1x4xf32>
    %c0_4 = arith.constant 0 : index
    %c0_5 = arith.constant 0 : index
    %6 = vector.load %arg0[%c0_4, %c0_5] : memref<8x32xf32, #tpu.memory_space<vmem>>, vector<8x32xf32>
    %cst = arith.constant dense<0.000000e+00> : vector<8x32xf32>
    %7 = tpu.matmul %6, %0, %cst {dimension_numbers = #tpu.dot_dimension_numbers<[1], [0], [0], [1], [0, 0, 1, 1], [], []>} : vector<8x32xf32>, vector<32x32xf32>, vector<8x32xf32> -> vector<8x32xf32>
    %8 = arith.addf %7, %3 : vector<8x32xf32>
    %9 = math.tanh %8 : vector<8x32xf32>
    %cst_6 = arith.constant dense<0.000000e+00> : vector<8x32xf32>
    %10 = tpu.matmul %9, %0, %cst_6 {dimension_numbers = #tpu.dot_dimension_numbers<[1], [0], [0], [1], [0, 0, 1, 1], [], []>} : vector<8x32xf32>, vector<32x32xf32>, vector<8x32xf32> -> vector<8x32xf32>
    %11 = arith.addf %10, %3 : vector<8x32xf32>
    %12 = math.tanh %11 : vector<8x32xf32>
    %cst_7 = arith.constant dense<0.000000e+00> : vector<8x32xf32>
    %13 = tpu.matmul %12, %0, %cst_7 {dimension_numbers = #tpu.dot_dimension_numbers<[1], [0], [0], [1], [0, 0, 1, 1], [], []>} : vector<8x32xf32>, vector<32x32xf32>, vector<8x32xf32> -> vector<8x32xf32>
    %14 = arith.addf %13, %3 : vector<8x32xf32>
    %15 = math.tanh %14 : vector<8x32xf32>
    %cst_8 = arith.constant dense<0.000000e+00> : vector<8x32xf32>
    %16 = tpu.matmul %15, %0, %cst_8 {dimension_numbers = #tpu.dot_dimension_numbers<[1], [0], [0], [1], [0, 0, 1, 1], [], []>} : vector<8x32xf32>, vector<32x32xf32>, vector<8x32xf32> -> vector<8x32xf32>
    %17 = arith.addf %16, %3 : vector<8x32xf32>
    %18 = math.tanh %17 : vector<8x32xf32>
    %cst_9 = arith.constant dense<0.000000e+00> : vector<8x32xf32>
    %19 = tpu.matmul %18, %0, %cst_9 {dimension_numbers = #tpu.dot_dimension_numbers<[1], [0], [0], [1], [0, 0, 1, 1], [], []>} : vector<8x32xf32>, vector<32x32xf32>, vector<8x32xf32> -> vector<8x32xf32>
    %20 = arith.addf %19, %3 : vector<8x32xf32>
    %21 = math.tanh %20 : vector<8x32xf32>
    %cst_10 = arith.constant dense<0.000000e+00> : vector<8x32xf32>
    %22 = tpu.matmul %21, %0, %cst_10 {dimension_numbers = #tpu.dot_dimension_numbers<[1], [0], [0], [1], [0, 0, 1, 1], [], []>} : vector<8x32xf32>, vector<32x32xf32>, vector<8x32xf32> -> vector<8x32xf32>
    %23 = arith.addf %22, %3 : vector<8x32xf32>
    %24 = math.tanh %23 : vector<8x32xf32>
    %cst_11 = arith.constant dense<0.000000e+00> : vector<8x32xf32>
    %25 = tpu.matmul %24, %0, %cst_11 {dimension_numbers = #tpu.dot_dimension_numbers<[1], [0], [0], [1], [0, 0, 1, 1], [], []>} : vector<8x32xf32>, vector<32x32xf32>, vector<8x32xf32> -> vector<8x32xf32>
    %26 = arith.addf %25, %3 : vector<8x32xf32>
    %27 = math.tanh %26 : vector<8x32xf32>
    %cst_12 = arith.constant dense<0.000000e+00> : vector<8x32xf32>
    %28 = tpu.matmul %27, %0, %cst_12 {dimension_numbers = #tpu.dot_dimension_numbers<[1], [0], [0], [1], [0, 0, 1, 1], [], []>} : vector<8x32xf32>, vector<32x32xf32>, vector<8x32xf32> -> vector<8x32xf32>
    %29 = arith.addf %28, %3 : vector<8x32xf32>
    %30 = math.tanh %29 : vector<8x32xf32>
    %31 = tpu.concatenate %9, %12, %15, %18, %21, %24, %27, %30 in 0 : vector<8x32xf32>, vector<8x32xf32>, vector<8x32xf32>, vector<8x32xf32>, vector<8x32xf32>, vector<8x32xf32>, vector<8x32xf32>, vector<8x32xf32> -> vector<64x32xf32>
    %cst_13 = arith.constant dense<0.000000e+00> : vector<64x4xf32>
    %32 = tpu.matmul %31, %4, %cst_13 {dimension_numbers = #tpu.dot_dimension_numbers<[1], [0], [0], [1], [0, 0, 1, 1], [], []>} : vector<64x32xf32>, vector<32x4xf32>, vector<64x4xf32> -> vector<64x4xf32>
    %33 = vector.broadcast %5 : vector<1x4xf32> to vector<64x4xf32>
    %34 = arith.addf %32, %33 : vector<64x4xf32>
    %c0_14 = arith.constant 0 : index
    %c0_15 = arith.constant 0 : index
    %35 = vector.load %arg2[%c0_14, %c0_15] : memref<64x4xf32, #tpu.memory_space<vmem>>, vector<64x4xf32>
    tpu.vector_store %arg2[%c0_14, %c0_15], %34 {strides = array<i32>} : memref<64x4xf32, #tpu.memory_space<vmem>>, vector<64x4xf32>,
    return
  }
}

</mosaic_0001>

<llo_original>
// kernel: decoder_forward.1
$region0: #{decoder_forward.1}
  #allocation0 [shape = 'u32[]', space=smem, size = 0x4, offset = 0x4, fixed_abs, tag = 'smem constant byte address 0x4 - core index']
  #allocation1 [shape = 'u32[144,128]{1,0:T(1,128)}', space=vmem, size = 0x12000, scoped, tag = 'internal scratch']
  %s0 = inlined_call_operand.vmem [shape: f32[8,32], index: 0, kind: input, shape index: {}]
  %s1 = inlined_call_operand.vmem [shape: f32[80,32], index: 1, kind: input, shape index: {}]
  %s2 = inlined_call_operand.vmem [shape: f32[64,4], index: 2, kind: output, shape index: {}]
  %s3 = sld [smem:[#allocation0]]
  $region18: #{decoder_forward.1} parent=0
    _
  %s5 = ssub.s32 1, %s3
  %s6 = scalar_select 0, %s5, %s3
  // Predicated region
  $region2: #{decoder_forward.1} parent=0 // pred_check
    _
  $region3: #{decoder_forward.1} parent=0 // pred_check_branch
    %8 = sbr.rel (0) target = $region5
  $region4: #{decoder_forward.1} parent=0 // pred_region
    _
  $region5: #{decoder_forward.1} parent=0 // pred_fallthru
    _
  // Predicated region
  $region6: #{decoder_forward.1} parent=0 // pred_check
    _
  $region7: #{decoder_forward.1} parent=0 // pred_check_branch
    %10 = sbr.rel (0) target = $region9
  $region8: #{decoder_forward.1} parent=0 // pred_region
    _
  $region9: #{decoder_forward.1} parent=0 // pred_fallthru
    _
  %v11 = vld [vmem:[%s1] sm:$0xff]
  %v12 = vld [vmem:[%s1 + $0x8] sm:$0xff]
  %v13 = vld [vmem:[%s1 + $0x10] sm:$0xff]
  %v14 = vld [vmem:[%s1 + $0x18] sm:$0xff]
  %v15 = vld [vmem:[%s1 + $0x20] sm:$0x1]
  %v16 = vlaneseq
  %v17 = vshrl.u32 %v16, 7
  %v18 = vsub.s32 0, %v17
  %v19 = vrot.slane %v15, %v18
  %v20 = vld [vmem:[%s1 + $0x28] sm:$0xff]
  %v21 = vld [vmem:[%s1 + $0x30] sm:$0xff]
  %v22 = vld [vmem:[%s1 + $0x38] sm:$0xff]
  %v23 = vld [vmem:[%s1 + $0x40] sm:$0xff]
  %v24 = vld [vmem:[%s1 + $0x48] sm:$0x1]
  %v25 = vld [vmem:[%s0] sm:$0xff]
  %vm26 = vcmask 261120
  %v28 = vsel %vm26, %v25, 0
  %30 = vmatprep.subr.mxu0 0.0
  %31 = vmatpush1.msra.mxu0 %v11
  %32 = vmatprep.subr.mxu0 0.0
  %33 = vmatpush1.msra.mxu0 %v12
  %34 = vmatprep.subr.mxu0 0.0
  %35 = vmatpush1.msra.mxu0 %v13
  %36 = vmatprep.subr.mxu0 0.0
  %37 = vmatpush1.msra.mxu0 %v14
  %38 = vmatprep.subr.mxu0 0.0
  %39 = vmatpush1.msra.mxu0 0.0
  %40 = vmatprep.subr.mxu0 0.0
  %41 = vmatpush1.msra.mxu0 0.0
  %42 = vmatprep.subr.mxu0 0.0
  %43 = vmatpush1.msra.mxu0 0.0
  %44 = vmatprep.subr.mxu0 0.0
  %45 = vmatpush1.msra.mxu0 0.0
  %46 = vmatprep.subr.mxu0 0.0
  %47 = vmatpush1.msra.mxu0 0.0
  %48 = vmatprep.subr.mxu0 0.0
  %49 = vmatpush1.msra.mxu0 0.0
  %50 = vmatprep.subr.mxu0 0.0
  %51 = vmatpush1.msra.mxu0 0.0
  %52 = vmatprep.subr.mxu0 0.0
  %53 = vmatpush1.msra.mxu0 0.0
  %54 = vmatprep.subr.mxu0 0.0
  %55 = vmatpush1.msra.mxu0 0.0
  %56 = vmatprep.subr.mxu0 0.0
  %57 = vmatpush1.msra.mxu0 0.0
  %58 = vmatprep.subr.mxu0 0.0
  %59 = vmatpush1.msra.mxu0 0.0
  %60 = vmatprep.subr.mxu0 0.0
  %61 = vmatpush1.msra.mxu0 0.0
  %62 = vmatprep.subr.mxu0 0.0
  %63 = vmatpush1.msra.mxu0 0.0
  %64 = vmatprep.subr.mxu0 0.0
  %65 = vmatpush1.msra.mxu0 0.0
  %66 = vmatprep.subr.mxu0 0.0
  %67 = vmatpush1.msra.mxu0 0.0
  %68 = vmatprep.subr.mxu0 0.0
  %69 = vmatpush1.msra.mxu0 0.0
  %70 = vmatprep.subr.mxu0 0.0
  %71 = vmatpush1.msra.mxu0 0.0
  %72 = vmatprep.subr.mxu0 0.0
  %73 = vmatpush1.msra.mxu0 0.0
  %74 = vmatprep.subr.mxu0 0.0
  %75 = vmatpush1.msra.mxu0 0.0
  %76 = vmatprep.subr.mxu0 0.0
  %77 = vmatpush1.msra.mxu0 0.0
  %78 = vmatprep.subr.mxu0 0.0
  %79 = vmatpush1.msra.mxu0 0.0
  %80 = vmatprep.subr.mxu0 0.0
  %81 = vmatpush1.msra.mxu0 0.0
  %82 = vmatprep.subr.mxu0 0.0
  %83 = vmatpush1.msra.mxu0 0.0
  %84 = vmatprep.subr.mxu0 0.0
  %85 = vmatpush1.msra.mxu0 0.0
  %86 = vmatprep.subr.mxu0 0.0
  %87 = vmatpush1.msra.mxu0 0.0
  %88 = vmatprep.subr.mxu0 0.0
  %89 = vmatpush1.msra.mxu0 0.0
  %90 = vmatprep.subr.mxu0 0.0
  %91 = vmatpush1.msra.mxu0 0.0
  %92 = vmatprep.subr.mxu0 0.0
  %93 = vmatpush1.msra.mxu0 0.0
  %94 = vmatprep.mubr.f32.mxu0 0.0
  %95 = vmatmul.mubr.f32.gmra.mrb[0].mxu0 %v28
  %v96 = vpop.f32.mrb[0].mxu0
  %v97 = vadd.f32 %v19, %v96
  %v98 = vpop.f32.mrb[0].mxu0
  %99 = vdwg.mxu0
  %v100 = vtanh.pop %v97
  %v102 = vsel %vm26, %v100, 0
  %104 = vmatprep.subr.mxu0 0.0
  %105 = vmatpush1.msra.mxu0 %v11
  %106 = vmatprep.subr.mxu0 0.0
  %107 = vmatpush1.msra.mxu0 %v12
  %108 = vmatprep.subr.mxu0 0.0
  %109 = vmatpush1.msra.mxu0 %v13
  %110 = vmatprep.subr.mxu0 0.0
  %111 = vmatpush1.msra.mxu0 %v14
  %112 = vmatprep.subr.mxu0 0.0
  %113 = vmatpush1.msra.mxu0 0.0
  %114 = vmatprep.subr.mxu0 0.0
  %115 = vmatpush1.msra.mxu0 0.0
  %116 = vmatprep.subr.mxu0 0.0
  %117 = vmatpush1.msra.mxu0 0.0
  %118 = vmatprep.subr.mxu0 0.0
  %119 = vmatpush1.msra.mxu0 0.0
  %120 = vmatprep.subr.mxu0 0.0
  %121 = vmatpush1.msra.mxu0 0.0
  %122 = vmatprep.subr.mxu0 0.0
  %123 = vmatpush1.msra.mxu0 0.0
  %124 = vmatprep.subr.mxu0 0.0
  %125 = vmatpush1.msra.mxu0 0.0
  %126 = vmatprep.subr.mxu0 0.0
  %127 = vmatpush1.msra.mxu0 0.0
  %128 = vmatprep.subr.mxu0 0.0
  %129 = vmatpush1.msra.mxu0 0.0
  %130 = vmatprep.subr.mxu0 0.0
  %131 = vmatpush1.msra.mxu0 0.0
  %132 = vmatprep.subr.mxu0 0.0
  %133 = vmatpush1.msra.mxu0 0.0
  %134 = vmatprep.subr.mxu0 0.0
  %135 = vmatpush1.msra.mxu0 0.0
  %136 = vmatprep.subr.mxu0 0.0
  %137 = vmatpush1.msra.mxu0 0.0
  %138 = vmatprep.subr.mxu0 0.0
  %139 = vmatpush1.msra.mxu0 0.0
  %140 = vmatprep.subr.mxu0 0.0
  %141 = vmatpush1.msra.mxu0 0.0
  %142 = vmatprep.subr.mxu0 0.0
  %143 = vmatpush1.msra.mxu0 0.0
  %144 = vmatprep.subr.mxu0 0.0
  %145 = vmatpush1.msra.mxu0 0.0
  %146 = vmatprep.subr.mxu0 0.0
  %147 = vmatpush1.msra.mxu0 0.0
  %148 = vmatprep.subr.mxu0 0.0
  %149 = vmatpush1.msra.mxu0 0.0
  %150 = vmatprep.subr.mxu0 0.0
  %151 = vmatpush1.msra.mxu0 0.0
  %152 = vmatprep.subr.mxu0 0.0
  %153 = vmatpush1.msra.mxu0 0.0
  %154 = vmatprep.subr.mxu0 0.0
  %155 = vmatpush1.msra.mxu0 0.0
  %156 = vmatprep.subr.mxu0 0.0
  %157 = vmatpush1.msra.mxu0 0.0
  %158 = vmatprep.subr.mxu0 0.0
  %159 = vmatpush1.msra.mxu0 0.0
  %160 = vmatprep.subr.mxu0 0.0
  %161 = vmatpush1.msra.mxu0 0.0
  %162 = vmatprep.subr.mxu0 0.0
  %163 = vmatpush1.msra.mxu0 0.0
  %164 = vmatprep.subr.mxu0 0.0
  %165 = vmatpush1.msra.mxu0 0.0
  %166 = vmatprep.subr.mxu0 0.0
  %167 = vmatpush1.msra.mxu0 0.0
  %168 = vmatprep.mubr.f32.mxu0 0.0
  %169 = vmatmul.mubr.f32.gmra.mrb[0].mxu0 %v102
  %v170 = vpop.f32.mrb[0].mxu0
  %v171 = vadd.f32 %v19, %v170
  %v172 = vpop.f32.mrb[0].mxu0
  %173 = vdwg.mxu0
  %v174 = vtanh.pop %v171
  %v176 = vsel %vm26, %v174, 0
  %178 = vmatprep.subr.mxu0 0.0
  %179 = vmatpush1.msra.mxu0 %v11
  %180 = vmatprep.subr.mxu0 0.0
  %181 = vmatpush1.msra.mxu0 %v12
  %182 = vmatprep.subr.mxu0 0.0
  %183 = vmatpush1.msra.mxu0 %v13
  %184 = vmatprep.subr.mxu0 0.0
  %185 = vmatpush1.msra.mxu0 %v14
  %186 = vmatprep.subr.mxu0 0.0
  %187 = vmatpush1.msra.mxu0 0.0
  %188 = vmatprep.subr.mxu0 0.0
  %189 = vmatpush1.msra.mxu0 0.0
  %190 = vmatprep.subr.mxu0 0.0
  %191 = vmatpush1.msra.mxu0 0.0
  %192 = vmatprep.subr.mxu0 0.0
  %193 = vmatpush1.msra.mxu0 0.0
  %194 = vmatprep.subr.mxu0 0.0
  %195 = vmatpush1.msra.mxu0 0.0
  %196 = vmatprep.subr.mxu0 0.0
  %197 = vmatpush1.msra.mxu0 0.0
  %198 = vmatprep.subr.mxu0 0.0
  %199 = vmatpush1.msra.mxu0 0.0
  %200 = vmatprep.subr.mxu0 0.0
  %201 = vmatpush1.msra.mxu0 0.0
  %202 = vmatprep.subr.mxu0 0.0
  %203 = vmatpush1.msra.mxu0 0.0
  %204 = vmatprep.subr.mxu0 0.0
  %205 = vmatpush1.msra.mxu0 0.0
  %206 = vmatprep.subr.mxu0 0.0
  %207 = vmatpush1.msra.mxu0 0.0
  %208 = vmatprep.subr.mxu0 0.0
  %209 = vmatpush1.msra.mxu0 0.0
  %210 = vmatprep.subr.mxu0 0.0
  %211 = vmatpush1.msra.mxu0 0.0
  %212 = vmatprep.subr.mxu0 0.0
  %213 = vmatpush1.msra.mxu0 0.0
  %214 = vmatprep.subr.mxu0 0.0
  %215 = vmatpush1.msra.mxu0 0.0
  %216 = vmatprep.subr.mxu0 0.0
  %217 = vmatpush1.msra.mxu0 0.0
  %218 = vmatprep.subr.mxu0 0.0
  %219 = vmatpush1.msra.mxu0 0.0
  %220 = vmatprep.subr.mxu0 0.0
  %221 = vmatpush1.msra.mxu0 0.0
  %222 = vmatprep.subr.mxu0 0.0
  %223 = vmatpush1.msra.mxu0 0.0
  %224 = vmatprep.subr.mxu0 0.0
  %225 = vmatpush1.msra.mxu0 0.0
  %226 = vmatprep.subr.mxu0 0.0
  %227 = vmatpush1.msra.mxu0 0.0
  %228 = vmatprep.subr.mxu0 0.0
  %229 = vmatpush1.msra.mxu0 0.0
  %230 = vmatprep.subr.mxu0 0.0
  %231 = vmatpush1.msra.mxu0 0.0
  %232 = vmatprep.subr.mxu0 0.0
  %233 = vmatpush1.msra.mxu0 0.0
  %234 = vmatprep.subr.mxu0 0.0
  %235 = vmatpush1.msra.mxu0 0.0
  %236 = vmatprep.subr.mxu0 0.0
  %237 = vmatpush1.msra.mxu0 0.0
  %238 = vmatprep.subr.mxu0 0.0
  %239 = vmatpush1.msra.mxu0 0.0
  %240 = vmatprep.subr.mxu0 0.0
  %241 = vmatpush1.msra.mxu0 0.0
  %242 = vmatprep.mubr.f32.mxu0 0.0
  %243 = vmatmul.mubr.f32.gmra.mrb[0].mxu0 %v176
  %v244 = vpop.f32.mrb[0].mxu0
  %v245 = vadd.f32 %v19, %v244
  %v246 = vpop.f32.mrb[0].mxu0
  %247 = vdwg.mxu0
  %v248 = vtanh.pop %v245
  %v250 = vsel %vm26, %v248, 0
  %252 = vmatprep.subr.mxu0 0.0
  %253 = vmatpush1.msra.mxu0 %v11
  %254 = vmatprep.subr.mxu0 0.0
  %255 = vmatpush1.msra.mxu0 %v12
  %256 = vmatprep.subr.mxu0 0.0
  %257 = vmatpush1.msra.mxu0 %v13
  %258 = vmatprep.subr.mxu0 0.0
  %259 = vmatpush1.msra.mxu0 %v14
  %260 = vmatprep.subr.mxu0 0.0
  %261 = vmatpush1.msra.mxu0 0.0
  %262 = vmatprep.subr.mxu0 0.0
  %263 = vmatpush1.msra.mxu0 0.0
  %264 = vmatprep.subr.mxu0 0.0
  %265 = vmatpush1.msra.mxu0 0.0
  %266 = vmatprep.subr.mxu0 0.0
  %267 = vmatpush1.msra.mxu0 0.0
  %268 = vmatprep.subr.mxu0 0.0
  %269 = vmatpush1.msra.mxu0 0.0
  %270 = vmatprep.subr.mxu0 0.0
  %271 = vmatpush1.msra.mxu0 0.0
  %272 = vmatprep.subr.mxu0 0.0
  %273 = vmatpush1.msra.mxu0 0.0
  %274 = vmatprep.subr.mxu0 0.0
  %275 = vmatpush1.msra.mxu0 0.0
  %276 = vmatprep.subr.mxu0 0.0
  %277 = vmatpush1.msra.mxu0 0.0
  %278 = vmatprep.subr.mxu0 0.0
  %279 = vmatpush1.msra.mxu0 0.0
  %280 = vmatprep.subr.mxu0 0.0
  %281 = vmatpush1.msra.mxu0 0.0
  %282 = vmatprep.subr.mxu0 0.0
  %283 = vmatpush1.msra.mxu0 0.0
  %284 = vmatprep.subr.mxu0 0.0
  %285 = vmatpush1.msra.mxu0 0.0
  %286 = vmatprep.subr.mxu0 0.0
  %287 = vmatpush1.msra.mxu0 0.0
  %288 = vmatprep.subr.mxu0 0.0
  %289 = vmatpush1.msra.mxu0 0.0
  %290 = vmatprep.subr.mxu0 0.0
  %291 = vmatpush1.msra.mxu0 0.0
  %292 = vmatprep.subr.mxu0 0.0
  %293 = vmatpush1.msra.mxu0 0.0
  %294 = vmatprep.subr.mxu0 0.0
  %295 = vmatpush1.msra.mxu0 0.0
  %296 = vmatprep.subr.mxu0 0.0
  %297 = vmatpush1.msra.mxu0 0.0
  %298 = vmatprep.subr.mxu0 0.0
  %299 = vmatpush1.msra.mxu0 0.0
  %300 = vmatprep.subr.mxu0 0.0
  %301 = vmatpush1.msra.mxu0 0.0
  %302 = vmatprep.subr.mxu0 0.0
  %303 = vmatpush1.msra.mxu0 0.0
  %304 = vmatprep.subr.mxu0 0.0
  %305 = vmatpush1.msra.mxu0 0.0
  %306 = vmatprep.subr.mxu0 0.0
  %307 = vmatpush1.msra.mxu0 0.0
  %308 = vmatprep.subr.mxu0 0.0
  %309 = vmatpush1.msra.mxu0 0.0
  %310 = vmatprep.subr.mxu0 0.0
  %311 = vmatpush1.msra.mxu0 0.0
  %312 = vmatprep.subr.mxu0 0.0
  %313 = vmatpush1.msra.mxu0 0.0
  %314 = vmatprep.subr.mxu0 0.0
  %315 = vmatpush1.msra.mxu0 0.0
  %316 = vmatprep.mubr.f32.mxu0 0.0
  %317 = vmatmul.mubr.f32.gmra.mrb[0].mxu0 %v250
  %v318 = vpop.f32.mrb[0].mxu0
  %v319 = vadd.f32 %v19, %v318
  %v320 = vpop.f32.mrb[0].mxu0
  %321 = vdwg.mxu0
  %v322 = vtanh.pop %v319
  %v324 = vsel %vm26, %v322, 0
  %326 = vmatprep.subr.mxu0 0.0
  %327 = vmatpush1.msra.mxu0 %v11
  %328 = vmatprep.subr.mxu0 0.0
  %329 = vmatpush1.msra.mxu0 %v12
  %330 = vmatprep.subr.mxu0 0.0
  %331 = vmatpush1.msra.mxu0 %v13
  %332 = vmatprep.subr.mxu0 0.0
  %333 = vmatpush1.msra.mxu0 %v14
  %334 = vmatprep.subr.mxu0 0.0
  %335 = vmatpush1.msra.mxu0 0.0
  %336 = vmatprep.subr.mxu0 0.0
  %337 = vmatpush1.msra.mxu0 0.0
  %338 = vmatprep.subr.mxu0 0.0
  %339 = vmatpush1.msra.mxu0 0.0
  %340 = vmatprep.subr.mxu0 0.0
  %341 = vmatpush1.msra.mxu0 0.0
  %342 = vmatprep.subr.mxu0 0.0
  %343 = vmatpush1.msra.mxu0 0.0
  %344 = vmatprep.subr.mxu0 0.0
  %345 = vmatpush1.msra.mxu0 0.0
  %346 = vmatprep.subr.mxu0 0.0
  %347 = vmatpush1.msra.mxu0 0.0
  %348 = vmatprep.subr.mxu0 0.0
  %349 = vmatpush1.msra.mxu0 0.0
  %350 = vmatprep.subr.mxu0 0.0
  %351 = vmatpush1.msra.mxu0 0.0
  %352 = vmatprep.subr.mxu0 0.0
  %353 = vmatpush1.msra.mxu0 0.0
  %354 = vmatprep.subr.mxu0 0.0
  %355 = vmatpush1.msra.mxu0 0.0
  %356 = vmatprep.subr.mxu0 0.0
  %357 = vmatpush1.msra.mxu0 0.0
  %358 = vmatprep.subr.mxu0 0.0
  %359 = vmatpush1.msra.mxu0 0.0
  %360 = vmatprep.subr.mxu0 0.0
  %361 = vmatpush1.msra.mxu0 0.0
  %362 = vmatprep.subr.mxu0 0.0
  %363 = vmatpush1.msra.mxu0 0.0
  %364 = vmatprep.subr.mxu0 0.0
  %365 = vmatpush1.msra.mxu0 0.0
  %366 = vmatprep.subr.mxu0 0.0
  %367 = vmatpush1.msra.mxu0 0.0
  %368 = vmatprep.subr.mxu0 0.0
  %369 = vmatpush1.msra.mxu0 0.0
  %370 = vmatprep.subr.mxu0 0.0
  %371 = vmatpush1.msra.mxu0 0.0
  %372 = vmatprep.subr.mxu0 0.0
  %373 = vmatpush1.msra.mxu0 0.0
  %374 = vmatprep.subr.mxu0 0.0
  %375 = vmatpush1.msra.mxu0 0.0
  %376 = vmatprep.subr.mxu0 0.0
  %377 = vmatpush1.msra.mxu0 0.0
  %378 = vmatprep.subr.mxu0 0.0
  %379 = vmatpush1.msra.mxu0 0.0
  %380 = vmatprep.subr.mxu0 0.0
  %381 = vmatpush1.msra.mxu0 0.0
  %382 = vmatprep.subr.mxu0 0.0
  %383 = vmatpush1.msra.mxu0 0.0
  %384 = vmatprep.subr.mxu0 0.0
  %385 = vmatpush1.msra.mxu0 0.0
  %386 = vmatprep.subr.mxu0 0.0
  %387 = vmatpush1.msra.mxu0 0.0
  %388 = vmatprep.subr.mxu0 0.0
  %389 = vmatpush1.msra.mxu0 0.0
  %390 = vmatprep.mubr.f32.mxu0 0.0
  %391 = vmatmul.mubr.f32.gmra.mrb[0].mxu0 %v324
  %v392 = vpop.f32.mrb[0].mxu0
  %v393 = vadd.f32 %v19, %v392
  %v394 = vpop.f32.mrb[0].mxu0
  %395 = vdwg.mxu0
  %v396 = vtanh.pop %v393
  %v398 = vsel %vm26, %v396, 0
  %400 = vmatprep.subr.mxu0 0.0
  %401 = vmatpush1.msra.mxu0 %v11
  %402 = vmatprep.subr.mxu0 0.0
  %403 = vmatpush1.msra.mxu0 %v12
  %404 = vmatprep.subr.mxu0 0.0
  %405 = vmatpush1.msra.mxu0 %v13
  %406 = vmatprep.subr.mxu0 0.0
  %407 = vmatpush1.msra.mxu0 %v14
  %408 = vmatprep.subr.mxu0 0.0
  %409 = vmatpush1.msra.mxu0 0.0
  %410 = vmatprep.subr.mxu0 0.0
  %411 = vmatpush1.msra.mxu0 0.0
  %412 = vmatprep.subr.mxu0 0.0
  %413 = vmatpush1.msra.mxu0 0.0
  %414 = vmatprep.subr.mxu0 0.0
  %415 = vmatpush1.msra.mxu0 0.0
  %416 = vmatprep.subr.mxu0 0.0
  %417 = vmatpush1.msra.mxu0 0.0
  %418 = vmatprep.subr.mxu0 0.0
  %419 = vmatpush1.msra.mxu0 0.0
  %420 = vmatprep.subr.mxu0 0.0
  %421 = vmatpush1.msra.mxu0 0.0
  %422 = vmatprep.subr.mxu0 0.0
  %423 = vmatpush1.msra.mxu0 0.0
  %424 = vmatprep.subr.mxu0 0.0
  %425 = vmatpush1.msra.mxu0 0.0
  %426 = vmatprep.subr.mxu0 0.0
  %427 = vmatpush1.msra.mxu0 0.0
  %428 = vmatprep.subr.mxu0 0.0
  %429 = vmatpush1.msra.mxu0 0.0
  %430 = vmatprep.subr.mxu0 0.0
  %431 = vmatpush1.msra.mxu0 0.0
  %432 = vmatprep.subr.mxu0 0.0
  %433 = vmatpush1.msra.mxu0 0.0
  %434 = vmatprep.subr.mxu0 0.0
  %435 = vmatpush1.msra.mxu0 0.0
  %436 = vmatprep.subr.mxu0 0.0
  %437 = vmatpush1.msra.mxu0 0.0
  %438 = vmatprep.subr.mxu0 0.0
  %439 = vmatpush1.msra.mxu0 0.0
  %440 = vmatprep.subr.mxu0 0.0
  %441 = vmatpush1.msra.mxu0 0.0
  %442 = vmatprep.subr.mxu0 0.0
  %443 = vmatpush1.msra.mxu0 0.0
  %444 = vmatprep.subr.mxu0 0.0
  %445 = vmatpush1.msra.mxu0 0.0
  %446 = vmatprep.subr.mxu0 0.0
  %447 = vmatpush1.msra.mxu0 0.0
  %448 = vmatprep.subr.mxu0 0.0
  %449 = vmatpush1.msra.mxu0 0.0
  %450 = vmatprep.subr.mxu0 0.0
  %451 = vmatpush1.msra.mxu0 0.0
  %452 = vmatprep.subr.mxu0 0.0
  %453 = vmatpush1.msra.mxu0 0.0
  %454 = vmatprep.subr.mxu0 0.0
  %455 = vmatpush1.msra.mxu0 0.0
  %456 = vmatprep.subr.mxu0 0.0
  %457 = vmatpush1.msra.mxu0 0.0
  %458 = vmatprep.subr.mxu0 0.0
  %459 = vmatpush1.msra.mxu0 0.0
  %460 = vmatprep.subr.mxu0 0.0
  %461 = vmatpush1.msra.mxu0 0.0
  %462 = vmatprep.subr.mxu0 0.0
  %463 = vmatpush1.msra.mxu0 0.0
  %464 = vmatprep.mubr.f32.mxu0 0.0
  %465 = vmatmul.mubr.f32.gmra.mrb[0].mxu0 %v398
  %v466 = vpop.f32.mrb[0].mxu0
  %v467 = vadd.f32 %v19, %v466
  %v468 = vpop.f32.mrb[0].mxu0
  %469 = vdwg.mxu0
  %v470 = vtanh.pop %v467
  %v472 = vsel %vm26, %v470, 0
  %474 = vmatprep.subr.mxu0 0.0
  %475 = vmatpush1.msra.mxu0 %v11
  %476 = vmatprep.subr.mxu0 0.0
  %477 = vmatpush1.msra.mxu0 %v12
  %478 = vmatprep.subr.mxu0 0.0
  %479 = vmatpush1.msra.mxu0 %v13
  %480 = vmatprep.subr.mxu0 0.0
  %481 = vmatpush1.msra.mxu0 %v14
  %482 = vmatprep.subr.mxu0 0.0
  %483 = vmatpush1.msra.mxu0 0.0
  %484 = vmatprep.subr.mxu0 0.0
  %485 = vmatpush1.msra.mxu0 0.0
  %486 = vmatprep.subr.mxu0 0.0
  %487 = vmatpush1.msra.mxu0 0.0
  %488 = vmatprep.subr.mxu0 0.0
  %489 = vmatpush1.msra.mxu0 0.0
  %490 = vmatprep.subr.mxu0 0.0
  %491 = vmatpush1.msra.mxu0 0.0
  %492 = vmatprep.subr.mxu0 0.0
  %493 = vmatpush1.msra.mxu0 0.0
  %494 = vmatprep.subr.mxu0 0.0
  %495 = vmatpush1.msra.mxu0 0.0
  %496 = vmatprep.subr.mxu0 0.0
  %497 = vmatpush1.msra.mxu0 0.0
  %498 = vmatprep.subr.mxu0 0.0
  %499 = vmatpush1.msra.mxu0 0.0
  %500 = vmatprep.subr.mxu0 0.0
  %501 = vmatpush1.msra.mxu0 0.0
  %502 = vmatprep.subr.mxu0 0.0
  %503 = vmatpush1.msra.mxu0 0.0
  %504 = vmatprep.subr.mxu0 0.0
  %505 = vmatpush1.msra.mxu0 0.0
  %506 = vmatprep.subr.mxu0 0.0
  %507 = vmatpush1.msra.mxu0 0.0
  %508 = vmatprep.subr.mxu0 0.0
  %509 = vmatpush1.msra.mxu0 0.0
  %510 = vmatprep.subr.mxu0 0.0
  %511 = vmatpush1.msra.mxu0 0.0
  %512 = vmatprep.subr.mxu0 0.0
  %513 = vmatpush1.msra.mxu0 0.0
  %514 = vmatprep.subr.mxu0 0.0
  %515 = vmatpush1.msra.mxu0 0.0
  %516 = vmatprep.subr.mxu0 0.0
  %517 = vmatpush1.msra.mxu0 0.0
  %518 = vmatprep.subr.mxu0 0.0
  %519 = vmatpush1.msra.mxu0 0.0
  %520 = vmatprep.subr.mxu0 0.0
  %521 = vmatpush1.msra.mxu0 0.0
  %522 = vmatprep.subr.mxu0 0.0
  %523 = vmatpush1.msra.mxu0 0.0
  %524 = vmatprep.subr.mxu0 0.0
  %525 = vmatpush1.msra.mxu0 0.0
  %526 = vmatprep.subr.mxu0 0.0
  %527 = vmatpush1.msra.mxu0 0.0
  %528 = vmatprep.subr.mxu0 0.0
  %529 = vmatpush1.msra.mxu0 0.0
  %530 = vmatprep.subr.mxu0 0.0
  %531 = vmatpush1.msra.mxu0 0.0
  %532 = vmatprep.subr.mxu0 0.0
  %533 = vmatpush1.msra.mxu0 0.0
  %534 = vmatprep.subr.mxu0 0.0
  %535 = vmatpush1.msra.mxu0 0.0
  %536 = vmatprep.subr.mxu0 0.0
  %537 = vmatpush1.msra.mxu0 0.0
  %538 = vmatprep.mubr.f32.mxu0 0.0
  %539 = vmatmul.mubr.f32.gmra.mrb[0].mxu0 %v472
  %v540 = vpop.f32.mrb[0].mxu0
  %v541 = vadd.f32 %v19, %v540
  %v542 = vpop.f32.mrb[0].mxu0
  %543 = vdwg.mxu0
  %v544 = vtanh.pop %v541
  %v546 = vsel %vm26, %v544, 0
  %548 = vmatprep.subr.mxu0 0.0
  %549 = vmatpush1.msra.mxu0 %v11
  %550 = vmatprep.subr.mxu0 0.0
  %551 = vmatpush1.msra.mxu0 %v12
  %552 = vmatprep.subr.mxu0 0.0
  %553 = vmatpush1.msra.mxu0 %v13
  %554 = vmatprep.subr.mxu0 0.0
  %555 = vmatpush1.msra.mxu0 %v14
  %556 = vmatprep.subr.mxu0 0.0
  %557 = vmatpush1.msra.mxu0 0.0
  %558 = vmatprep.subr.mxu0 0.0
  %559 = vmatpush1.msra.mxu0 0.0
  %560 = vmatprep.subr.mxu0 0.0
  %561 = vmatpush1.msra.mxu0 0.0
  %562 = vmatprep.subr.mxu0 0.0
  %563 = vmatpush1.msra.mxu0 0.0
  %564 = vmatprep.subr.mxu0 0.0
  %565 = vmatpush1.msra.mxu0 0.0
  %566 = vmatprep.subr.mxu0 0.0
  %567 = vmatpush1.msra.mxu0 0.0
  %568 = vmatprep.subr.mxu0 0.0
  %569 = vmatpush1.msra.mxu0 0.0
  %570 = vmatprep.subr.mxu0 0.0
  %571 = vmatpush1.msra.mxu0 0.0
  %572 = vmatprep.subr.mxu0 0.0
  %573 = vmatpush1.msra.mxu0 0.0
  %574 = vmatprep.subr.mxu0 0.0
  %575 = vmatpush1.msra.mxu0 0.0
  %576 = vmatprep.subr.mxu0 0.0
  %577 = vmatpush1.msra.mxu0 0.0
  %578 = vmatprep.subr.mxu0 0.0
  %579 = vmatpush1.msra.mxu0 0.0
  %580 = vmatprep.subr.mxu0 0.0
  %581 = vmatpush1.msra.mxu0 0.0
  %582 = vmatprep.subr.mxu0 0.0
  %583 = vmatpush1.msra.mxu0 0.0
  %584 = vmatprep.subr.mxu0 0.0
  %585 = vmatpush1.msra.mxu0 0.0
  %586 = vmatprep.subr.mxu0 0.0
  %587 = vmatpush1.msra.mxu0 0.0
  %588 = vmatprep.subr.mxu0 0.0
  %589 = vmatpush1.msra.mxu0 0.0
  %590 = vmatprep.subr.mxu0 0.0
  %591 = vmatpush1.msra.mxu0 0.0
  %592 = vmatprep.subr.mxu0 0.0
  %593 = vmatpush1.msra.mxu0 0.0
  %594 = vmatprep.subr.mxu0 0.0
  %595 = vmatpush1.msra.mxu0 0.0
  %596 = vmatprep.subr.mxu0 0.0
  %597 = vmatpush1.msra.mxu0 0.0
  %598 = vmatprep.subr.mxu0 0.0
  %599 = vmatpush1.msra.mxu0 0.0
  %600 = vmatprep.subr.mxu0 0.0
  %601 = vmatpush1.msra.mxu0 0.0
  %602 = vmatprep.subr.mxu0 0.0
  %603 = vmatpush1.msra.mxu0 0.0
  %604 = vmatprep.subr.mxu0 0.0
  %605 = vmatpush1.msra.mxu0 0.0
  %606 = vmatprep.subr.mxu0 0.0
  %607 = vmatpush1.msra.mxu0 0.0
  %608 = vmatprep.subr.mxu0 0.0
  %609 = vmatpush1.msra.mxu0 0.0
  %610 = vmatprep.subr.mxu0 0.0
  %611 = vmatpush1.msra.mxu0 0.0
  %612 = vmatprep.mubr.f32.mxu0 0.0
  %613 = vmatmul.mubr.f32.gmra.mrb[0].mxu0 %v546
  %v614 = vpop.f32.mrb[0].mxu0
  %v615 = vadd.f32 %v19, %v614
  %v616 = vpop.f32.mrb[0].mxu0
  %617 = vdwg.mxu0
  %v618 = vtanh.pop %v615
  %v619 = vlaneseq
  %v620 = vshrl.u32 %v619, 7
  %v621 = vsub.s32 0, %v620
  %v622 = vrot.slane %v24, %v621
  %v624 = vsel %vm26, %v618, 0
  %626 = vmatprep.subr.mxu0 0.0
  %627 = vmatpush1.msra.mxu0 %v20
  %628 = vmatprep.subr.mxu0 0.0
  %629 = vmatpush1.msra.mxu0 %v21
  %630 = vmatprep.subr.mxu0 0.0
  %631 = vmatpush1.msra.mxu0 %v22
  %632 = vmatprep.subr.mxu0 0.0
  %633 = vmatpush1.msra.mxu0 %v23
  %634 = vmatprep.subr.mxu0 0.0
  %635 = vmatpush1.msra.mxu0 0.0
  %636 = vmatprep.subr.mxu0 0.0
  %637 = vmatpush1.msra.mxu0 0.0
  %638 = vmatprep.subr.mxu0 0.0
  %639 = vmatpush1.msra.mxu0 0.0
  %640 = vmatprep.subr.mxu0 0.0
  %641 = vmatpush1.msra.mxu0 0.0
  %642 = vmatprep.subr.mxu0 0.0
  %643 = vmatpush1.msra.mxu0 0.0
  %644 = vmatprep.subr.mxu0 0.0
  %645 = vmatpush1.msra.mxu0 0.0
  %646 = vmatprep.subr.mxu0 0.0
  %647 = vmatpush1.msra.mxu0 0.0
  %648 = vmatprep.subr.mxu0 0.0
  %649 = vmatpush1.msra.mxu0 0.0
  %650 = vmatprep.subr.mxu0 0.0
  %651 = vmatpush1.msra.mxu0 0.0
  %652 = vmatprep.subr.mxu0 0.0
  %653 = vmatpush1.msra.mxu0 0.0
  %654 = vmatprep.subr.mxu0 0.0
  %655 = vmatpush1.msra.mxu0 0.0
  %656 = vmatprep.subr.mxu0 0.0
  %657 = vmatpush1.msra.mxu0 0.0
  %658 = vmatprep.subr.mxu0 0.0
  %659 = vmatpush1.msra.mxu0 0.0
  %660 = vmatprep.subr.mxu0 0.0
  %661 = vmatpush1.msra.mxu0 0.0
  %662 = vmatprep.subr.mxu0 0.0
  %663 = vmatpush1.msra.mxu0 0.0
  %664 = vmatprep.subr.mxu0 0.0
  %665 = vmatpush1.msra.mxu0 0.0
  %666 = vmatprep.subr.mxu0 0.0
  %667 = vmatpush1.msra.mxu0 0.0
  %668 = vmatprep.subr.mxu0 0.0
  %669 = vmatpush1.msra.mxu0 0.0
  %670 = vmatprep.subr.mxu0 0.0
  %671 = vmatpush1.msra.mxu0 0.0
  %672 = vmatprep.subr.mxu0 0.0
  %673 = vmatpush1.msra.mxu0 0.0
  %674 = vmatprep.subr.mxu0 0.0
  %675 = vmatpush1.msra.mxu0 0.0
  %676 = vmatprep.subr.mxu0 0.0
  %677 = vmatpush1.msra.mxu0 0.0
  %678 = vmatprep.subr.mxu0 0.0
  %679 = vmatpush1.msra.mxu0 0.0
  %680 = vmatprep.subr.mxu0 0.0
  %681 = vmatpush1.msra.mxu0 0.0
  %682 = vmatprep.subr.mxu0 0.0
  %683 = vmatpush1.msra.mxu0 0.0
  %684 = vmatprep.subr.mxu0 0.0
  %685 = vmatpush1.msra.mxu0 0.0
  %686 = vmatprep.subr.mxu0 0.0
  %687 = vmatpush1.msra.mxu0 0.0
  %688 = vmatprep.subr.mxu0 0.0
  %689 = vmatpush1.msra.mxu0 0.0
  %690 = vmatprep.mubr.f32.mxu0 0.0
  %691 = vmatmul.mubr.f32.gmra.mrb[0].mxu0 %v102
  %v692 = vpop.f32.mrb[0].mxu0
  %v693 = vadd.f32 %v622, %v692
  %v694 = vpop.f32.mrb[0].mxu0
  %695 = vmatprep.mubr.f32.mxu0 0.0
  %696 = vmatmul.mubr.f32.gmra.mrb[0].mxu0 %v176
  %v697 = vpop.f32.mrb[0].mxu0
  %v698 = vadd.f32 %v622, %v697
  %v699 = vpop.f32.mrb[0].mxu0
  %700 = vmatprep.mubr.f32.mxu0 0.0
  %701 = vmatmul.mubr.f32.gmra.mrb[0].mxu0 %v250
  %v702 = vpop.f32.mrb[0].mxu0
  %v703 = vadd.f32 %v622, %v702
  %v704 = vpop.f32.mrb[0].mxu0
  %705 = vmatprep.mubr.f32.mxu0 0.0
  %706 = vmatmul.mubr.f32.gmra.mrb[0].mxu0 %v324
  %v707 = vpop.f32.mrb[0].mxu0
  %v708 = vadd.f32 %v622, %v707
  %v709 = vpop.f32.mrb[0].mxu0
  %710 = vmatprep.mubr.f32.mxu0 0.0
  %711 = vmatmul.mubr.f32.gmra.mrb[0].mxu0 %v398
  %v712 = vpop.f32.mrb[0].mxu0
  %v713 = vadd.f32 %v622, %v712
  %v714 = vpop.f32.mrb[0].mxu0
  %715 = vmatprep.mubr.f32.mxu0 0.0
  %716 = vmatmul.mubr.f32.gmra.mrb[0].mxu0 %v472
  %v717 = vpop.f32.mrb[0].mxu0
  %v718 = vadd.f32 %v622, %v717
  %v719 = vpop.f32.mrb[0].mxu0
  %720 = vmatprep.mubr.f32.mxu0 0.0
  %721 = vmatmul.mubr.f32.gmra.mrb[0].mxu0 %v546
  %v722 = vpop.f32.mrb[0].mxu0
  %v723 = vadd.f32 %v622, %v722
  %v724 = vpop.f32.mrb[0].mxu0
  %725 = vmatprep.mubr.f32.mxu0 0.0
  %726 = vmatmul.mubr.f32.gmra.mrb[0].mxu0 %v624
  %v727 = vpop.f32.mrb[0].mxu0
  %v728 = vadd.f32 %v622, %v727
  %v729 = vpop.f32.mrb[0].mxu0
  %730 = vdwg.mxu0
  %vm731 = vcmask 31744
  %732 = vst.msk [vmem:[%s2] sm:$0xff] %vm731, %v693
  %733 = vst.msk [vmem:[%s2 + $0x8] sm:$0xff] %vm731, %v698
  %734 = vst.msk [vmem:[%s2 + $0x10] sm:$0xff] %vm731, %v703
  %735 = vst.msk [vmem:[%s2 + $0x18] sm:$0xff] %vm731, %v708
  %736 = vst.msk [vmem:[%s2 + $0x20] sm:$0xff] %vm731, %v713
  %737 = vst.msk [vmem:[%s2 + $0x28] sm:$0xff] %vm731, %v718
  %738 = vst.msk [vmem:[%s2 + $0x30] sm:$0xff] %vm731, %v723
  %739 = vst.msk [vmem:[%s2 + $0x38] sm:$0xff] %vm731, %v728
  // Predicated region
  $region10: #{decoder_forward.1} parent=0 // pred_check
    _
  $region11: #{decoder_forward.1} parent=0 // pred_check_branch
    %741 = sbr.rel (0) target = $region13
  $region12: #{decoder_forward.1} parent=0 // pred_region
    _
  $region13: #{decoder_forward.1} parent=0 // pred_fallthru
    _
  // Predicated region
  $region14: #{decoder_forward.1} parent=0 // pred_check
    _
  $region15: #{decoder_forward.1} parent=0 // pred_check_branch
    %743 = sbr.rel (0) target = $region17
  $region16: #{decoder_forward.1} parent=0 // pred_region
    _
  $region17: #{decoder_forward.1} parent=0 // pred_fallthru
    _

</llo_original>
